<compile_context>
chip_gen: v6e
topology: v6e:2x2x1
jax: 0.10.0
libtpu: 0.0.40
codegen_flags: <defaults>
</compile_context>

<pallas_src>
import jax
import jax.numpy as jnp
from jax import lax
from jax.experimental import pallas as pl
from jax.experimental.pallas import tpu as pltpu

RATE = 0.455
SCALE = 0.6
A = 1.0
B = 1.0
QUAD_COEF = SCALE * (A + B)   # a == b branch collapses to one coefficient.


def _round_up(x, m):
    return -(-x // m) * m


def _vmem_limits():
    """(vmem_limit_bytes, pipelined_budget_bytes) derived from the chip."""
    cap = None
    try:
        info = pltpu.get_tpu_info()
        cap = getattr(info, "vmem_capacity_bytes", None)
    except Exception:
        cap = None
    if not cap:
        cap = 64 * 1024 * 1024          # conservative fallback (v7x per-TC)
    limit = min(cap // 2, 64 * 1024 * 1024)   # 64 MiB on v5e/v6e, 32 MiB on v7x
    budget = (3 * limit) // 4                  # headroom for compiler scratch
    return limit, budget


def _choose_row_tile(num_factors, d, itemsize, max_n, budget, max_tile=2048):
    """Largest row tile (multiple of 8) whose footprint fits the budget.

    Footprint per row = 3*F inputs x 2 pipeline buffers + f32 elementwise
    working set (upcast temporaries); the tiny (1, D) partial output is
    ignored.
    """
    bytes_per_row = 3 * num_factors * 2 * d * itemsize + 6 * d * 4
    tile = min(max_tile, max(8, budget // bytes_per_row))
    tile = max(8, (int(tile) // 8) * 8)
    return min(tile, _round_up(max_n, 8))


def _make_er2_kernel(factor_ns, row_tile, num_blocks):
    """Kernel body: per-block partial sums over all factors (no carried state)."""
    total_rows = num_blocks * row_tile
    need_any_mask = any(n < total_rows for n in factor_ns)

    def kernel(*refs):
        in_refs = refs[: 3 * len(factor_ns)]
        out_ref = refs[3 * len(factor_ns)]

        if need_any_mask:
            i = pl.program_id(0)
            # Global row ids of this tile (shared across factors).
            row_ids = i * row_tile + lax.broadcasted_iota(
                jnp.int32, (row_tile, 1), 0)

        partial = None
        for f, n_f in enumerate(factor_ns):
            h = in_refs[3 * f + 0][...].astype(jnp.float32)
            r = in_refs[3 * f + 1][...].astype(jnp.float32)
            t = in_refs[3 * f + 2][...].astype(jnp.float32)

            h2 = h * h
            t2 = t * t
            r2 = r * r
            # rate * (|h|^3 + |t|^3), with |x|^3 = |x| * x^2 (VPU only).
            cube = jnp.abs(h) * h2 + jnp.abs(t) * t2
            # scale * (a + b) * (h^2 + t^2) * r^2  (a == b branch).
            quad = (h2 + t2) * r2
            c = RATE * cube + QUAD_COEF * quad

            if n_f < total_rows:
                # Ragged tail / shorter factor: zero out rows past n_f.  The
                # select never propagates garbage from over-the-edge reads.
                c = jnp.where(row_ids < n_f, c, 0.0)

            partial = c if partial is None else partial + c

        # Per-block partial: sublane (row) reduce only (idle XLU slot); the
        # lane reduce over D happens on the tiny partials array in the wrapper.
        out_ref[...] = jnp.sum(partial, axis=0, keepdims=True)

    return kernel


def _factor_spec(n_f, row_tile, d, num_blocks):
    """BlockSpec for one (N_f, D) input; clamps blocks past a short factor."""
    last_block = max(pl.cdiv(n_f, row_tile) - 1, 0)
    if last_block >= num_blocks - 1:
        return pl.BlockSpec((row_tile, d), lambda i: (i, 0))
    # Blocks entirely beyond this factor's rows re-read its last valid block;
    # the in-kernel mask zeroes their contribution.
    return pl.BlockSpec(
        (row_tile, d), lambda i, _lb=last_block: (jnp.minimum(i, _lb), 0))


def er2_forward(factors, weight, *, row_tile=None):
    """ER2.forward: factors is a sequence of (h, r, t) 2-D embedding matrices."""
    num_factors = len(factors)
    assert num_factors >= 1
    d = factors[0][0].shape[1]
    itemsize = jnp.dtype(factors[0][0].dtype).itemsize

    factor_ns = []
    inputs = []
    for (h, r, t) in factors:
        n = h.shape[0]
        for x in (h, r, t):
            assert x.ndim == 2 and x.shape == (n, d)
            inputs.append(x)
        factor_ns.append(n)
    max_n = max(factor_ns)

    vmem_limit, budget = _vmem_limits()
    if row_tile is None:
        row_tile = _choose_row_tile(num_factors, d, itemsize, max_n, budget)
    num_blocks = pl.cdiv(max_n, row_tile)

    in_specs = []
    for n_f in factor_ns:
        spec = _factor_spec(n_f, row_tile, d, num_blocks)
        in_specs.extend([spec, spec, spec])

    partials = pl.pallas_call(
        _make_er2_kernel(tuple(factor_ns), row_tile, num_blocks),
        out_shape=jax.ShapeDtypeStruct((num_blocks, d), jnp.float32),
        grid_spec=pltpu.PrefetchScalarGridSpec(
            num_scalar_prefetch=0,
            grid=(num_blocks,),
            in_specs=in_specs,
            out_specs=pl.BlockSpec((1, d), lambda i: (i, 0)),
            scratch_shapes=[],
        ),
        compiler_params=pltpu.CompilerParams(
            # No cross-step state: safe to shard the row axis across both
            # TensorCores on v7x (each core writes its own partial rows).
            dimension_semantics=("parallel",),
            vmem_limit_bytes=vmem_limit,
        ),
    )(*inputs)

    norm = jnp.sum(partials)
    # IMPORTANT: PyTorch divides by h.shape[0] of the LAST factor only
    # (loop-variable leak in the reference module). Do NOT "fix" this.
    return weight * norm / factors[-1][0].shape[0]


def _er2_reference(factors, weight):
    norm = jnp.float32(0.0)
    for (h, r, t) in factors:
        h = h.astype(jnp.float32)
        r = r.astype(jnp.float32)
        t = t.astype(jnp.float32)
        norm = norm + RATE * jnp.sum(jnp.abs(t) ** 3 + jnp.abs(h) ** 3)
        norm = norm + SCALE * jnp.sum(
            A * h ** 2 * r ** 2 + A * t ** 2 * r ** 2
            + B * h ** 2 * r ** 2 + B * t ** 2 * r ** 2)
    return weight * norm / factors[-1][0].shape[0]


if __name__ == "__main__":
    weight = 0.01
    D = 128

    def make_factor(key, n):
        k = jax.random.split(key, 3)
        return (jax.random.normal(k[0], (n, D), jnp.float32),
                jax.random.normal(k[1], (n, D), jnp.float32),
                jax.random.normal(k[2], (n, D), jnp.float32))

    # Test 1: two factors, equal N (no masking, single block).
    k1, k2, k3, k4, k5 = jax.random.split(jax.random.PRNGKey(0), 5)
    factors = [make_factor(k1, 16), make_factor(k2, 16)]
    out = jax.block_until_ready(er2_forward(factors, weight))
    ref = _er2_reference(factors, weight)
    assert jnp.allclose(out, ref, rtol=1e-4, atol=1e-5), (out, ref)

    # Test 2: single factor, N not a multiple of 8's of the tile (mask path
    # unused since the tile shrinks to the rounded problem size).
    factors2 = [make_factor(k3, 40)]
    out2 = jax.block_until_ready(er2_forward(factors2, weight))
    ref2 = _er2_reference(factors2, weight)
    assert jnp.allclose(out2, ref2, rtol=1e-4, atol=1e-5), (out2, ref2)

    # Test 3: factors of different lengths with a forced small row tile —
    # exercises multi-block parallel partials, in-kernel ragged-tail masking
    # and the clamped index_map for the shorter factor.
    factors3 = [make_factor(k4, 24), make_factor(k5, 56)]
    out3 = jax.block_until_ready(er2_forward(factors3, weight, row_tile=8))
    ref3 = _er2_reference(factors3, weight)
    assert jnp.allclose(out3, ref3, rtol=1e-4, atol=1e-5), (out3, ref3)

    print("KERNEL_OK")
</pallas_src>

<mosaic_0001>
module attributes {stable_mosaic.version = 11 : i64} {
  func.func @kernel(%arg0: i32, %arg1: memref<16x128xf32, #tpu.memory_space<vmem>>, %arg2: memref<16x128xf32, #tpu.memory_space<vmem>>, %arg3: memref<16x128xf32, #tpu.memory_space<vmem>>, %arg4: memref<16x128xf32, #tpu.memory_space<vmem>>, %arg5: memref<16x128xf32, #tpu.memory_space<vmem>>, %arg6: memref<16x128xf32, #tpu.memory_space<vmem>>, %arg7: memref<1x128xf32, #tpu.memory_space<vmem>>) attributes {dimension_semantics = [#tpu.dimension_semantics<parallel>], iteration_bounds = array<i64: 1>, scalar_prefetch = 0 : i64, scratch_operands = 0 : i64, tpu.core_type = #tpu.core_type<tc>, window_params = [{transform_indices = @transform_0, window_bounds = array<i64: 16, 128>}, {transform_indices = @transform_1, window_bounds = array<i64: 16, 128>}, {transform_indices = @transform_2, window_bounds = array<i64: 16, 128>}, {transform_indices = @transform_3, window_bounds = array<i64: 16, 128>}, {transform_indices = @transform_4, window_bounds = array<i64: 16, 128>}, {transform_indices = @transform_5, window_bounds = array<i64: 16, 128>}, {transform_indices = @transform_6, window_bounds = array<i64: 1, 128>}]} {
    %c0 = arith.constant 0 : index
    %c0_0 = arith.constant 0 : index
    %0 = vector.load %arg1[%c0, %c0_0] : memref<16x128xf32, #tpu.memory_space<vmem>>, vector<16x128xf32>
    %c0_1 = arith.constant 0 : index
    %c0_2 = arith.constant 0 : index
    %1 = vector.load %arg2[%c0_1, %c0_2] : memref<16x128xf32, #tpu.memory_space<vmem>>, vector<16x128xf32>
    %c0_3 = arith.constant 0 : index
    %c0_4 = arith.constant 0 : index
    %2 = vector.load %arg3[%c0_3, %c0_4] : memref<16x128xf32, #tpu.memory_space<vmem>>, vector<16x128xf32>
    %3 = arith.mulf %0, %0 : vector<16x128xf32>
    %4 = arith.mulf %2, %2 : vector<16x128xf32>
    %5 = arith.mulf %1, %1 : vector<16x128xf32>
    %6 = math.absf %0 : vector<16x128xf32>
    %7 = arith.mulf %6, %3 : vector<16x128xf32>
    %8 = math.absf %2 : vector<16x128xf32>
    %9 = arith.mulf %8, %4 : vector<16x128xf32>
    %10 = arith.addf %7, %9 : vector<16x128xf32>
    %11 = arith.addf %3, %4 : vector<16x128xf32>
    %12 = arith.mulf %11, %5 : vector<16x128xf32>
    %cst = arith.constant 4.550000e-01 : f32
    %13 = vector.broadcast %cst : f32 to vector<16x128xf32>
    %14 = arith.mulf %13, %10 : vector<16x128xf32>
    %cst_5 = arith.constant 1.200000e+00 : f32
    %15 = vector.broadcast %cst_5 : f32 to vector<16x128xf32>
    %16 = arith.mulf %15, %12 : vector<16x128xf32>
    %17 = arith.addf %14, %16 : vector<16x128xf32>
    %c0_6 = arith.constant 0 : index
    %c0_7 = arith.constant 0 : index
    %18 = vector.load %arg4[%c0_6, %c0_7] : memref<16x128xf32, #tpu.memory_space<vmem>>, vector<16x128xf32>
    %c0_8 = arith.constant 0 : index
    %c0_9 = arith.constant 0 : index
    %19 = vector.load %arg5[%c0_8, %c0_9] : memref<16x128xf32, #tpu.memory_space<vmem>>, vector<16x128xf32>
    %c0_10 = arith.constant 0 : index
    %c0_11 = arith.constant 0 : index
    %20 = vector.load %arg6[%c0_10, %c0_11] : memref<16x128xf32, #tpu.memory_space<vmem>>, vector<16x128xf32>
    %21 = arith.mulf %18, %18 : vector<16x128xf32>
    %22 = arith.mulf %20, %20 : vector<16x128xf32>
    %23 = arith.mulf %19, %19 : vector<16x128xf32>
    %24 = math.absf %18 : vector<16x128xf32>
    %25 = arith.mulf %24, %21 : vector<16x128xf32>
    %26 = math.absf %20 : vector<16x128xf32>
    %27 = arith.mulf %26, %22 : vector<16x128xf32>
    %28 = arith.addf %25, %27 : vector<16x128xf32>
    %29 = arith.addf %21, %22 : vector<16x128xf32>
    %30 = arith.mulf %29, %23 : vector<16x128xf32>
    %cst_12 = arith.constant 4.550000e-01 : f32
    %31 = vector.broadcast %cst_12 : f32 to vector<16x128xf32>
    %32 = arith.mulf %31, %28 : vector<16x128xf32>
    %cst_13 = arith.constant 1.200000e+00 : f32
    %33 = vector.broadcast %cst_13 : f32 to vector<16x128xf32>
    %34 = arith.mulf %33, %30 : vector<16x128xf32>
    %35 = arith.addf %32, %34 : vector<16x128xf32>
    %36 = arith.addf %17, %35 : vector<16x128xf32>
    %cst_14 = arith.constant dense<0.000000e+00> : vector<128xf32>
    %37 = vector.multi_reduction <add>, %36, %cst_14 [0] : vector<16x128xf32> to vector<128xf32>
    %38 = vector.shape_cast %37 : vector<128xf32> to vector<1x128xf32>
    %c0_15 = arith.constant 0 : index
    %c0_16 = arith.constant 0 : index
    %39 = vector.load %arg7[%c0_15, %c0_16] : memref<1x128xf32, #tpu.memory_space<vmem>>, vector<1x128xf32>
    tpu.vector_store %arg7[%c0_15, %c0_16], %38 {strides = array<i32>} : memref<1x128xf32, #tpu.memory_space<vmem>>, vector<1x128xf32>,
    return
  }
  func.func @transform_0(%arg0: i32) -> (i32, i32) {
    %c0_i32 = arith.constant 0 : i32
    %c0_i32_0 = arith.constant 0 : i32
    return %arg0, %c0_i32 : i32, i32
  }
  func.func @transform_1(%arg0: i32) -> (i32, i32) {
    %c0_i32 = arith.constant 0 : i32
    %c0_i32_0 = arith.constant 0 : i32
    return %arg0, %c0_i32 : i32, i32
  }
  func.func @transform_2(%arg0: i32) -> (i32, i32) {
    %c0_i32 = arith.constant 0 : i32
    %c0_i32_0 = arith.constant 0 : i32
    return %arg0, %c0_i32 : i32, i32
  }
  func.func @transform_3(%arg0: i32) -> (i32, i32) {
    %c0_i32 = arith.constant 0 : i32
    %c0_i32_0 = arith.constant 0 : i32
    return %arg0, %c0_i32 : i32, i32
  }
  func.func @transform_4(%arg0: i32) -> (i32, i32) {
    %c0_i32 = arith.constant 0 : i32
    %c0_i32_0 = arith.constant 0 : i32
    return %arg0, %c0_i32 : i32, i32
  }
  func.func @transform_5(%arg0: i32) -> (i32, i32) {
    %c0_i32 = arith.constant 0 : i32
    %c0_i32_0 = arith.constant 0 : i32
    return %arg0, %c0_i32 : i32, i32
  }
  func.func @transform_6(%arg0: i32) -> (i32, i32) {
    %c0_i32 = arith.constant 0 : i32
    %c0_i32_0 = arith.constant 0 : i32
    return %arg0, %c0_i32 : i32, i32
  }
}

</mosaic_0001>

<llo_original>
// kernel: tpu_custom_call.1
$region0: #{tpu_custom_call.1}
  #allocation0 [shape = 'u32[]', space=smem, size = 0x4, offset = 0x4, fixed_abs, tag = 'smem constant byte address 0x4 - core index']
  #allocation1 [shape = 'u32[144,128]{1,0:T(1,128)}', space=vmem, size = 0x12000, scoped, tag = 'internal scratch']
  %s0 = inlined_call_operand.hbm [shape: f32[16,128], index: 0, kind: input, shape index: {}]
  %s1 = inlined_call_operand.hbm [shape: f32[16,128], index: 1, kind: input, shape index: {}]
  %s2 = inlined_call_operand.hbm [shape: f32[16,128], index: 2, kind: input, shape index: {}]
  %s3 = inlined_call_operand.hbm [shape: f32[16,128], index: 3, kind: input, shape index: {}]
  %s4 = inlined_call_operand.hbm [shape: f32[16,128], index: 4, kind: input, shape index: {}]
  %s5 = inlined_call_operand.hbm [shape: f32[16,128], index: 5, kind: input, shape index: {}]
  %s6 = inlined_call_operand.hbm [shape: f32[1,128], index: 6, kind: output, shape index: {}]
  %s7 = sld [smem:[#allocation0]]
  $region58: #{tpu_custom_call.1} parent=0
    _
  %s9 = ssub.s32 1, %s7
  %s10 = scalar_select 0, %s9, %s7
  $region1: #{tpu_custom_call.1} parent=0
    #allocation2 [shape = 'u8[8192]{0}', space=vmem, size = 0x2000, scoped, tag = 'input window, operand 0, single buffered']
    #allocation3 [shape = 's32[1]{0}', space=sflag, size = 0x4, scoped, tag = 'scoped memory for tpu_custom_call.1']
    #allocation4 [shape = 's32[1]{0}', space=sflag, size = 0x4, scoped, tag = 'scoped memory for tpu_custom_call.1']
    #allocation5 [shape = 'u8[8192]{0}', space=vmem, size = 0x2000, scoped, tag = 'input window, operand 1, single buffered']
    #allocation6 [shape = 's32[1]{0}', space=sflag, size = 0x4, scoped, tag = 'scoped memory for tpu_custom_call.1']
    #allocation7 [shape = 'u8[8192]{0}', space=vmem, size = 0x2000, scoped, tag = 'input window, operand 2, single buffered']
    #allocation8 [shape = 'u8[8192]{0}', space=vmem, size = 0x2000, scoped, tag = 'input window, operand 3, single buffered']
    #allocation9 [shape = 's32[1]{0}', space=sflag, size = 0x4, scoped, tag = 'scoped memory for tpu_custom_call.1']
    #allocation10 [shape = 'u8[8192]{0}', space=vmem, size = 0x2000, scoped, tag = 'input window, operand 4, single buffered']
    #allocation11 [shape = 'u8[8192]{0}', space=vmem, size = 0x2000, scoped, tag = 'input window, operand 5, single buffered']
    #allocation12 [shape = 's32[1]{0}', space=sflag, size = 0x4, scoped, tag = 'scoped memory for tpu_custom_call.1']
    #allocation13 [shape = 'u8[512]{0}', space=vmem, size = 0x400, scoped, tag = 'output window, operand 0, single buffered']
    %11 = vsyncpa [#allocation3], 0
    %12 = vsyncpa [#allocation6], 0
    %13 = vsyncpa [#allocation9], 0
    %14 = vsyncpa [#allocation12], 0
    %15 = vsyncpa [#allocation4], 0
    // Predicated region
    $region2: #{tpu_custom_call.1} parent=1 // pred_check
      _
    $region3: #{tpu_custom_call.1} parent=1 // pred_check_branch
      %17 = sbr.rel (0) target = $region5
    $region4: #{tpu_custom_call.1} parent=1 // pred_region
      %s19 = ssub.s32 256, 256
      %20 = vsyncadd [#allocation3], %s19
      %s21 = sshll.u32 [#allocation2], 4
      %s22 = int_to_ptr.vmem [resolvable:$true] %s21
      %27 = dma.hbm_to_vmem [thread:$0]  %s0, 256, %s22, [#allocation3], 128, 128, 8
    $region5: #{tpu_custom_call.1} parent=1 // pred_fallthru
      _
    // Predicated region
    $region6: #{tpu_custom_call.1} parent=1 // pred_check
      _
    $region7: #{tpu_custom_call.1} parent=1 // pred_check_branch
      %29 = sbr.rel (0) target = $region9
    $region8: #{tpu_custom_call.1} parent=1 // pred_region
      %s31 = ssub.s32 256, 256
      %32 = vsyncadd [#allocation6], %s31
      %s33 = sshll.u32 [#allocation5], 4
      %s34 = int_to_ptr.vmem [resolvable:$true] %s33
      %39 = dma.hbm_to_vmem [thread:$0]  %s1, 256, %s34, [#allocation6], 128, 128, 8
    $region9: #{tpu_custom_call.1} parent=1 // pred_fallthru
      _
    // Predicated region
    $region10: #{tpu_custom_call.1} parent=1 // pred_check
      _
    $region11: #{tpu_custom_call.1} parent=1 // pred_check_branch
      %41 = sbr.rel (0) target = $region13
    $region12: #{tpu_custom_call.1} parent=1 // pred_region
      %s43 = ssub.s32 256, 256
      %44 = vsyncadd [#allocation6], %s43
      %s45 = sshll.u32 [#allocation7], 4
      %s46 = int_to_ptr.vmem [resolvable:$true] %s45
      %51 = dma.hbm_to_vmem [thread:$0]  %s2, 256, %s46, [#allocation6], 128, 128, 8
    $region13: #{tpu_custom_call.1} parent=1 // pred_fallthru
      _
    // Predicated region
    $region14: #{tpu_custom_call.1} parent=1 // pred_check
      _
    $region15: #{tpu_custom_call.1} parent=1 // pred_check_branch
      %53 = sbr.rel (0) target = $region17
    $region16: #{tpu_custom_call.1} parent=1 // pred_region
      %s55 = ssub.s32 256, 256
      %56 = vsyncadd [#allocation9], %s55
      %s57 = sshll.u32 [#allocation8], 4
      %s58 = int_to_ptr.vmem [resolvable:$true] %s57
      %63 = dma.hbm_to_vmem [thread:$0]  %s3, 256, %s58, [#allocation9], 128, 128, 8
    $region17: #{tpu_custom_call.1} parent=1 // pred_fallthru
      _
    // Predicated region
    $region18: #{tpu_custom_call.1} parent=1 // pred_check
      _
    $region19: #{tpu_custom_call.1} parent=1 // pred_check_branch
      %65 = sbr.rel (0) target = $region21
    $region20: #{tpu_custom_call.1} parent=1 // pred_region
      %s67 = ssub.s32 256, 256
      %68 = vsyncadd [#allocation9], %s67
      %s69 = sshll.u32 [#allocation10], 4
      %s70 = int_to_ptr.vmem [resolvable:$true] %s69
      %75 = dma.hbm_to_vmem [thread:$0]  %s4, 256, %s70, [#allocation9], 128, 128, 8
    $region21: #{tpu_custom_call.1} parent=1 // pred_fallthru
      _
    // Predicated region
    $region22: #{tpu_custom_call.1} parent=1 // pred_check
      _
    $region23: #{tpu_custom_call.1} parent=1 // pred_check_branch
      %77 = sbr.rel (0) target = $region25
    $region24: #{tpu_custom_call.1} parent=1 // pred_region
      %s79 = ssub.s32 256, 256
      %80 = vsyncadd [#allocation12], %s79
      %s81 = sshll.u32 [#allocation11], 4
      %s82 = int_to_ptr.vmem [resolvable:$true] %s81
      %87 = dma.hbm_to_vmem [thread:$0]  %s5, 256, %s82, [#allocation12], 128, 128, 8
    $region25: #{tpu_custom_call.1} parent=1 // pred_fallthru
      _
    // Predicated region
    $region26: #{tpu_custom_call.1} parent=1 // pred_check
      _
    $region27: #{tpu_custom_call.1} parent=1 // pred_check_branch
      %89 = sbr.rel (0) target = $region29
    $region28: #{tpu_custom_call.1} parent=1 // pred_region
      %90 = dma.done [#allocation3], 256
    $region29: #{tpu_custom_call.1} parent=1 // pred_fallthru
      _
    // Predicated region
    $region30: #{tpu_custom_call.1} parent=1 // pred_check
      _
    $region31: #{tpu_custom_call.1} parent=1 // pred_check_branch
      %92 = sbr.rel (0) target = $region33
    $region32: #{tpu_custom_call.1} parent=1 // pred_region
      %93 = dma.done [#allocation6], 256
    $region33: #{tpu_custom_call.1} parent=1 // pred_fallthru
      _
    // Predicated region
    $region34: #{tpu_custom_call.1} parent=1 // pred_check
      _
    $region35: #{tpu_custom_call.1} parent=1 // pred_check_branch
      %95 = sbr.rel (0) target = $region37
    $region36: #{tpu_custom_call.1} parent=1 // pred_region
      %96 = dma.done [#allocation6], 256
    $region37: #{tpu_custom_call.1} parent=1 // pred_fallthru
      _
    // Predicated region
    $region38: #{tpu_custom_call.1} parent=1 // pred_check
      _
    $region39: #{tpu_custom_call.1} parent=1 // pred_check_branch
      %98 = sbr.rel (0) target = $region41
    $region40: #{tpu_custom_call.1} parent=1 // pred_region
      %99 = dma.done [#allocation9], 256
    $region41: #{tpu_custom_call.1} parent=1 // pred_fallthru
      _
    // Predicated region
    $region42: #{tpu_custom_call.1} parent=1 // pred_check
      _
    $region43: #{tpu_custom_call.1} parent=1 // pred_check_branch
      %101 = sbr.rel (0) target = $region45
    $region44: #{tpu_custom_call.1} parent=1 // pred_region
      %102 = dma.done [#allocation9], 256
    $region45: #{tpu_custom_call.1} parent=1 // pred_fallthru
      _
    // Predicated region
    $region46: #{tpu_custom_call.1} parent=1 // pred_check
      _
    $region47: #{tpu_custom_call.1} parent=1 // pred_check_branch
      %104 = sbr.rel (0) target = $region49
    $region48: #{tpu_custom_call.1} parent=1 // pred_region
      %105 = dma.done [#allocation12], 256
    $region49: #{tpu_custom_call.1} parent=1 // pred_fallthru
      _
    %v106 = vld [vmem:[#allocation2] sm:$0xff]
    %v107 = vld [vmem:[#allocation2 + $0x8] sm:$0xff]
    %v108 = vld [vmem:[#allocation5] sm:$0xff]
    %v109 = vld [vmem:[#allocation5 + $0x8] sm:$0xff]
    %v110 = vld [vmem:[#allocation7] sm:$0xff]
    %v111 = vld [vmem:[#allocation7 + $0x8] sm:$0xff]
    %v112 = vmul.f32 %v106, %v106
    %v113 = vmul.f32 %v107, %v107
    %v114 = vmul.f32 %v110, %v110
    %v115 = vmul.f32 %v111, %v111
    %v116 = vmul.f32 %v108, %v108
    %v117 = vmul.f32 %v109, %v109
    %v118 = vand.u32 2147483647, %v106
    %v119 = vand.u32 2147483647, %v107
    %v120 = vmul.f32 %v118, %v112
    %v121 = vmul.f32 %v119, %v113
    %v122 = vand.u32 2147483647, %v110
    %v123 = vand.u32 2147483647, %v111
    %v124 = vmul.f32 %v122, %v114
    %v125 = vmul.f32 %v123, %v115
    %v126 = vadd.f32 %v120, %v124
    %v127 = vadd.f32 %v121, %v125
    %v128 = vadd.f32 %v112, %v114
    %v129 = vadd.f32 %v113, %v115
    %v130 = vmul.f32 %v128, %v116
    %v131 = vmul.f32 %v129, %v117
    %v132 = vmul.f32 %v126, 0.455
    %v133 = vmul.f32 %v127, 0.455
    %v134 = vmul.f32 %v130, 1.2
    %v135 = vmul.f32 %v131, 1.2
    %v136 = vadd.f32 %v132, %v134
    %v137 = vadd.f32 %v133, %v135
    %v138 = vld [vmem:[#allocation8] sm:$0xff]
    %v139 = vld [vmem:[#allocation8 + $0x8] sm:$0xff]
    %v140 = vld [vmem:[#allocation10] sm:$0xff]
    %v141 = vld [vmem:[#allocation10 + $0x8] sm:$0xff]
    %v142 = vld [vmem:[#allocation11] sm:$0xff]
    %v143 = vld [vmem:[#allocation11 + $0x8] sm:$0xff]
    %v144 = vmul.f32 %v138, %v138
    %v145 = vmul.f32 %v139, %v139
    %v146 = vmul.f32 %v142, %v142
    %v147 = vmul.f32 %v143, %v143
    %v148 = vmul.f32 %v140, %v140
    %v149 = vmul.f32 %v141, %v141
    %v150 = vand.u32 2147483647, %v138
    %v151 = vand.u32 2147483647, %v139
    %v152 = vmul.f32 %v150, %v144
    %v153 = vmul.f32 %v151, %v145
    %v154 = vand.u32 2147483647, %v142
    %v155 = vand.u32 2147483647, %v143
    %v156 = vmul.f32 %v154, %v146
    %v157 = vmul.f32 %v155, %v147
    %v158 = vadd.f32 %v152, %v156
    %v159 = vadd.f32 %v153, %v157
    %v160 = vadd.f32 %v144, %v146
    %v161 = vadd.f32 %v145, %v147
    %v162 = vmul.f32 %v160, %v148
    %v163 = vmul.f32 %v161, %v149
    %v164 = vmul.f32 %v158, 0.455
    %v165 = vmul.f32 %v159, 0.455
    %v166 = vmul.f32 %v162, 1.2
    %v167 = vmul.f32 %v163, 1.2
    %v168 = vadd.f32 %v164, %v166
    %v169 = vadd.f32 %v165, %v167
    %v170 = vadd.f32 %v136, %v168
    %v171 = vadd.f32 %v137, %v169
    %v172 = vadd.f32 %v170, %v171
    %v173 = vrot.slane %v172, 4
    %v174 = vadd.f32 %v172, %v173
    %v175 = vrot.slane %v174, 2
    %v176 = vadd.f32 %v174, %v175
    %v177 = vrot.slane %v176, 1
    %v178 = vadd.f32 %v176, %v177
    %179 = vst [vmem:[#allocation13] sm:$0x1] %v178
    // Predicated region
    $region50: #{tpu_custom_call.1} parent=1 // pred_check
      _
    $region51: #{tpu_custom_call.1} parent=1 // pred_check_branch
      %181 = sbr.rel (0) target = $region53
    $region52: #{tpu_custom_call.1} parent=1 // pred_region
      %s183 = ssub.s32 16, 16
      %184 = vsyncadd [#allocation4], %s183
      %s186 = sshll.u32 [#allocation13], 4
      %s187 = int_to_ptr.vmem [resolvable:$true] %s186
      %189 = dma.vmem_to_hbm [thread:$0]  %s187, 16, %s6, [#allocation4]
    $region53: #{tpu_custom_call.1} parent=1 // pred_fallthru
      _
    // Predicated region
    $region54: #{tpu_custom_call.1} parent=1 // pred_check
      _
    $region55: #{tpu_custom_call.1} parent=1 // pred_check_branch
      %191 = sbr.rel (0) target = $region57
    $region56: #{tpu_custom_call.1} parent=1 // pred_region
      %192 = dma.done [#allocation4], 16
    $region57: #{tpu_custom_call.1} parent=1 // pred_fallthru
      _
    %193 = vsyncpa [#allocation3], 1
    %194 = vsyncpa [#allocation6], 1
    %195 = vsyncpa [#allocation9], 1
    %196 = vsyncpa [#allocation12], 1
    %197 = vsyncpa [#allocation4], 1

</llo_original>
